<compile_context>
chip_gen: v7x
topology: tpu7x:2x2x1
jax: 0.10.0
libtpu: 0.0.40
codegen_flags: <defaults>
</compile_context>

<pallas_src>
import functools

import jax
import jax.numpy as jnp
from jax.experimental import pallas as pl
from jax.experimental.pallas import tpu as pltpu


def _linear_kernel(x_ref, wt_ref, b_ref, o_ref):
    # x_ref: (TB, D), wt_ref: (D, C_pad), b_ref: (1, C_pad), o_ref: (TB, C_pad)
    y = jnp.dot(x_ref[...], wt_ref[...], preferred_element_type=jnp.float32)
    # Bias is already f32; single vadd per vreg, then cast to the output dtype.
    o_ref[...] = (y + b_ref[...]).astype(o_ref.dtype)


def _round_up(n, m):
    return ((n + m - 1) // m) * m


@functools.partial(
    jax.jit, static_argnames=("block_rows", "out_dtype", "return_padded"))
def latent_classifier_forward(x, weight, bias, *, block_rows=4096,
                              out_dtype=None, return_padded=False):
    """y = x @ weight.T + bias (nn.Linear forward) via a tiled Pallas kernel.

    x:      (B, D)   activations (f32 or bf16 — never cast here; bf16 only
                     saves bandwidth if it already lives in HBM as bf16)
    weight: (C, D)   PyTorch nn.Linear weight layout
    bias:   (C,)
    out_dtype:       output dtype (default x.dtype); bf16 halves writeback.
    return_padded:   if True, return the lane-dense (B, C_pad) slab and skip
                     the post-kernel column slice (for fusing consumers).
    returns (B, C)   or (B, C_pad) if return_padded.
    """
    B, D = x.shape
    C, D2 = weight.shape
    assert D == D2

    LANE, SUB = 128, 8
    out_dtype = x.dtype if out_dtype is None else out_dtype

    # Lane-dense output: pad classes up to a multiple of 128 (unmasked vst).
    C_pad = _round_up(max(C, LANE), LANE)

    # Batch tile: big enough to amortize the ~0.35 us per-grid-step overhead,
    # sublane-aligned, capped so double-buffered x + out stays well inside
    # v5e's 16 MiB scoped-VMEM default (and trivially inside v6e/v7x's 32 MiB).
    block_rows = min(block_rows, 8192)
    TB = min(block_rows, _round_up(B, SUB))
    TB = max(SUB, (TB // SUB) * SUB)
    # v7x: "parallel" only pays off with >= 2 grid steps to shard across its
    # 2 TensorCores; split the tile when the whole batch would fit in one.
    if -(-B // TB) < 2 and B >= 2 * SUB:
        TB = max(SUB, _round_up(-(-B // 2), SUB))

    # One-time (small, static) parameter prep: transpose + zero-pad the weight
    # and match its dtype to x so the per-step MXU dot has no convert; bias
    # stays f32 for an f32 epilogue (v5e has no bf16 VPU).
    wt = jnp.zeros((D, C_pad), dtype=x.dtype).at[:, :C].set(
        weight.astype(x.dtype).T)
    b2 = jnp.zeros((1, C_pad), dtype=jnp.float32).at[:, :C].set(
        bias.astype(jnp.float32))

    out = pl.pallas_call(
        _linear_kernel,
        out_shape=jax.ShapeDtypeStruct((B, C_pad), out_dtype),
        grid=(pl.cdiv(B, TB),),
        in_specs=[
            pl.BlockSpec((TB, D), lambda i: (i, 0)),       # streamed x tiles
            pl.BlockSpec((D, C_pad), lambda i: (0, 0)),    # resident weight
            pl.BlockSpec((1, C_pad), lambda i: (0, 0)),    # resident bias
        ],
        out_specs=pl.BlockSpec((TB, C_pad), lambda i: (i, 0)),
        compiler_params=pltpu.CompilerParams(
            dimension_semantics=("parallel",),
        ),
    )(x, wt, b2)

    if return_padded or C == C_pad:
        return out
    return out[:, :C]


def init_params(key, latent_dim, num_classes, dtype=jnp.float32):
    # Mirrors nn.Linear's uniform(-1/sqrt(fan_in), 1/sqrt(fan_in)) init.
    kw, kb = jax.random.split(key)
    bound = 1.0 / (latent_dim ** 0.5)
    weight = jax.random.uniform(kw, (num_classes, latent_dim), dtype,
                                minval=-bound, maxval=bound)
    bias = jax.random.uniform(kb, (num_classes,), dtype,
                              minval=-bound, maxval=bound)
    return weight, bias


if __name__ == "__main__":
    key = jax.random.PRNGKey(0)
    kx, kp, kx2 = jax.random.split(key, 3)

    batch = 8
    latent_dim = 32
    num_classes = 10

    x = jax.random.normal(kx, (batch, latent_dim), dtype=jnp.float32)
    weight, bias = init_params(kp, latent_dim, num_classes)

    # Small-shape run (single grid step).
    out = latent_classifier_forward(x, weight, bias)
    out = jax.block_until_ready(out)
    ref = x @ weight.T + bias
    assert out.shape == (batch, num_classes)
    assert jnp.allclose(out, ref, atol=1e-5, rtol=1e-5)

    # Multi-step batch grid over UNPADDED x: B=20, TB=8 -> 3 steps with a
    # masked partial last block (no wrapper-side jnp.pad).
    x2 = jax.random.normal(kx2, (20, latent_dim), dtype=jnp.float32)
    out2 = latent_classifier_forward(x2, weight, bias, block_rows=8)
    out2 = jax.block_until_ready(out2)
    ref2 = x2 @ weight.T + bias
    assert out2.shape == (20, num_classes)
    assert jnp.allclose(out2, ref2, atol=1e-5, rtol=1e-5)

    # bf16 path: x already bf16 upstream (no wrapper cast), bf16 output, and
    # the lane-dense padded slab returned directly (no post-kernel slice).
    x2_bf16 = x2.astype(jnp.bfloat16)
    out3 = latent_classifier_forward(x2_bf16, weight, bias, block_rows=8,
                                     out_dtype=jnp.bfloat16,
                                     return_padded=True)
    out3 = jax.block_until_ready(out3)
    assert out3.shape == (20, 128)
    assert jnp.allclose(out3[:, :num_classes].astype(jnp.float32), ref2,
                        atol=3e-2, rtol=3e-2)

    print("KERNEL_OK")
</pallas_src>

<mosaic_0001>
module attributes {stable_mosaic.version = 11 : i64} {
  func.func @_linear_kernel(%arg0: i32, %arg1: memref<8x32xf32, #tpu.memory_space<vmem>>, %arg2: memref<32x128xf32, #tpu.memory_space<vmem>>, %arg3: memref<1x128xf32, #tpu.memory_space<vmem>>, %arg4: memref<8x128xf32, #tpu.memory_space<vmem>>) attributes {dimension_semantics = [#tpu.dimension_semantics<parallel>], iteration_bounds = array<i64: 1>, scalar_prefetch = 0 : i64, scratch_operands = 0 : i64, tpu.core_type = #tpu.core_type<tc>, window_params = [{transform_indices = @transform_0, window_bounds = array<i64: 8, 32>}, {pipeline_mode = #tpu.pipeline_mode<synchronous>, transform_indices = @transform_1, window_bounds = array<i64: 32, 128>}, {pipeline_mode = #tpu.pipeline_mode<synchronous>, transform_indices = @transform_2, window_bounds = array<i64: 1, 128>}, {transform_indices = @transform_3, window_bounds = array<i64: 8, 128>}]} {
    %c0 = arith.constant 0 : index
    %c0_0 = arith.constant 0 : index
    %0 = vector.load %arg1[%c0, %c0_0] : memref<8x32xf32, #tpu.memory_space<vmem>>, vector<8x32xf32>
    %c0_1 = arith.constant 0 : index
    %c0_2 = arith.constant 0 : index
    %1 = vector.load %arg2[%c0_1, %c0_2] : memref<32x128xf32, #tpu.memory_space<vmem>>, vector<32x128xf32>
    %cst = arith.constant dense<0.000000e+00> : vector<8x128xf32>
    %2 = tpu.matmul %0, %1, %cst {dimension_numbers = #tpu.dot_dimension_numbers<[1], [0], [0], [1], [0, 0, 1, 1], [], []>} : vector<8x32xf32>, vector<32x128xf32>, vector<8x128xf32> -> vector<8x128xf32>
    %c0_3 = arith.constant 0 : index
    %c0_4 = arith.constant 0 : index
    %3 = vector.load %arg3[%c0_3, %c0_4] : memref<1x128xf32, #tpu.memory_space<vmem>>, vector<1x128xf32>
    %4 = vector.broadcast %3 : vector<1x128xf32> to vector<8x128xf32>
    %5 = arith.addf %2, %4 : vector<8x128xf32>
    %c0_5 = arith.constant 0 : index
    %c0_6 = arith.constant 0 : index
    %6 = vector.load %arg4[%c0_5, %c0_6] : memref<8x128xf32, #tpu.memory_space<vmem>>, vector<8x128xf32>
    tpu.vector_store %arg4[%c0_5, %c0_6], %5 {strides = array<i32>} : memref<8x128xf32, #tpu.memory_space<vmem>>, vector<8x128xf32>,
    return
  }
  func.func @transform_0(%arg0: i32) -> (i32, i32) {
    %c0_i32 = arith.constant 0 : i32
    %c0_i32_0 = arith.constant 0 : i32
    return %arg0, %c0_i32 : i32, i32
  }
  func.func @transform_1(%arg0: i32) -> (i32, i32) {
    %c0_i32 = arith.constant 0 : i32
    %c0_i32_0 = arith.constant 0 : i32
    %c0_i32_1 = arith.constant 0 : i32
    return %c0_i32, %c0_i32_0 : i32, i32
  }
  func.func @transform_2(%arg0: i32) -> (i32, i32) {
    %c0_i32 = arith.constant 0 : i32
    %c0_i32_0 = arith.constant 0 : i32
    %c0_i32_1 = arith.constant 0 : i32
    return %c0_i32, %c0_i32_0 : i32, i32
  }
  func.func @transform_3(%arg0: i32) -> (i32, i32) {
    %c0_i32 = arith.constant 0 : i32
    %c0_i32_0 = arith.constant 0 : i32
    return %arg0, %c0_i32 : i32, i32
  }
}

</mosaic_0001>

<llo_original>
// kernel: latent_classifier_forward.1
$region0: #{latent_classifier_forward.1}
  #allocation0 [shape = 'u32[]', space=smem, size = 0x4, offset = 0x4, fixed_abs, tag = 'smem constant byte address 0x4 - core index']
  #allocation1 [shape = 'u32[144,128]{1,0:T(1,128)}', space=vmem, size = 0x12000, scoped, tag = 'internal scratch']
  %s0 = inlined_call_operand.vmem [shape: f32[8,32], index: 0, kind: input, shape index: {}]
  %s1 = inlined_call_operand.vmem [shape: f32[32,128], index: 1, kind: input, shape index: {}]
  %s2 = inlined_call_operand.vmem [shape: f32[1,128], index: 2, kind: input, shape index: {}]
  %s3 = inlined_call_operand.hbm [shape: f32[8,128], index: 3, kind: output, shape index: {}]
  %s4 = sld [smem:[#allocation0]]
  $region22: #{latent_classifier_forward.1} parent=0
    _
  %s6 = ssub.s32 1, %s4
  %s7 = scalar_select 0, %s6, %s4
  $region1: #{latent_classifier_forward.1} parent=0
    #allocation2 [shape = 'u8[4096]{0}', space=vmem, size = 0x1000, scoped, tag = 'output window, operand 0, single buffered']
    #allocation3 [shape = 's32[1]{0}', space=sflag, size = 0x4, scoped, tag = 'scoped memory for latent_classifier_forward.1']
    %8 = vsyncpa [#allocation3], 0
    // Predicated region
    $region2: #{latent_classifier_forward.1} parent=1 // pred_check
      _
    $region3: #{latent_classifier_forward.1} parent=1 // pred_check_branch
      %10 = sbr.rel (0) target = $region5
    $region4: #{latent_classifier_forward.1} parent=1 // pred_region
      _
    $region5: #{latent_classifier_forward.1} parent=1 // pred_fallthru
      _
    // Predicated region
    $region6: #{latent_classifier_forward.1} parent=1 // pred_check
      _
    $region7: #{latent_classifier_forward.1} parent=1 // pred_check_branch
      %12 = sbr.rel (0) target = $region9
    $region8: #{latent_classifier_forward.1} parent=1 // pred_region
      _
    $region9: #{latent_classifier_forward.1} parent=1 // pred_fallthru
      _
    // Predicated region
    $region10: #{latent_classifier_forward.1} parent=1 // pred_check
      _
    $region11: #{latent_classifier_forward.1} parent=1 // pred_check_branch
      %14 = sbr.rel (0) target = $region13
    $region12: #{latent_classifier_forward.1} parent=1 // pred_region
      _
    $region13: #{latent_classifier_forward.1} parent=1 // pred_fallthru
      _
    %v15 = vld [vmem:[%s0] sm:$0xff]
    %v16 = vld [vmem:[%s1] sm:$0xff]
    %v17 = vld [vmem:[%s1 + $0x8] sm:$0xff]
    %v18 = vld [vmem:[%s1 + $0x10] sm:$0xff]
    %v19 = vld [vmem:[%s1 + $0x18] sm:$0xff]
    %v20 = vld [vmem:[%s2] sm:$0x1]
    %v22 = vlaneseq
    %v23 = vshrl.u32 %v22, 7
    %v24 = vsub.s32 0, %v23
    %v25 = vrot.slane %v20, %v24
    %vm27 = vcmask 261120
    %v29 = vsel %vm27, %v15, 0
    %31 = vmatprep.subr.mxu0 0.0
    %32 = vmatpush1.msra.mxu0 %v16
    %33 = vmatprep.subr.mxu0 0.0
    %34 = vmatpush1.msra.mxu0 %v17
    %35 = vmatprep.subr.mxu0 0.0
    %36 = vmatpush1.msra.mxu0 %v18
    %37 = vmatprep.subr.mxu0 0.0
    %38 = vmatpush1.msra.mxu0 %v19
    %39 = vmatprep.subr.mxu0 0.0
    %40 = vmatpush1.msra.mxu0 0.0
    %41 = vmatprep.subr.mxu0 0.0
    %42 = vmatpush1.msra.mxu0 0.0
    %43 = vmatprep.subr.mxu0 0.0
    %44 = vmatpush1.msra.mxu0 0.0
    %45 = vmatprep.subr.mxu0 0.0
    %46 = vmatpush1.msra.mxu0 0.0
    %47 = vmatprep.subr.mxu0 0.0
    %48 = vmatpush1.msra.mxu0 0.0
    %49 = vmatprep.subr.mxu0 0.0
    %50 = vmatpush1.msra.mxu0 0.0
    %51 = vmatprep.subr.mxu0 0.0
    %52 = vmatpush1.msra.mxu0 0.0
    %53 = vmatprep.subr.mxu0 0.0
    %54 = vmatpush1.msra.mxu0 0.0
    %55 = vmatprep.subr.mxu0 0.0
    %56 = vmatpush1.msra.mxu0 0.0
    %57 = vmatprep.subr.mxu0 0.0
    %58 = vmatpush1.msra.mxu0 0.0
    %59 = vmatprep.subr.mxu0 0.0
    %60 = vmatpush1.msra.mxu0 0.0
    %61 = vmatprep.subr.mxu0 0.0
    %62 = vmatpush1.msra.mxu0 0.0
    %63 = vmatprep.subr.mxu0 0.0
    %64 = vmatpush1.msra.mxu0 0.0
    %65 = vmatprep.subr.mxu0 0.0
    %66 = vmatpush1.msra.mxu0 0.0
    %67 = vmatprep.subr.mxu0 0.0
    %68 = vmatpush1.msra.mxu0 0.0
    %69 = vmatprep.subr.mxu0 0.0
    %70 = vmatpush1.msra.mxu0 0.0
    %71 = vmatprep.subr.mxu0 0.0
    %72 = vmatpush1.msra.mxu0 0.0
    %73 = vmatprep.subr.mxu0 0.0
    %74 = vmatpush1.msra.mxu0 0.0
    %75 = vmatprep.subr.mxu0 0.0
    %76 = vmatpush1.msra.mxu0 0.0
    %77 = vmatprep.subr.mxu0 0.0
    %78 = vmatpush1.msra.mxu0 0.0
    %79 = vmatprep.subr.mxu0 0.0
    %80 = vmatpush1.msra.mxu0 0.0
    %81 = vmatprep.subr.mxu0 0.0
    %82 = vmatpush1.msra.mxu0 0.0
    %83 = vmatprep.subr.mxu0 0.0
    %84 = vmatpush1.msra.mxu0 0.0
    %85 = vmatprep.subr.mxu0 0.0
    %86 = vmatpush1.msra.mxu0 0.0
    %87 = vmatprep.subr.mxu0 0.0
    %88 = vmatpush1.msra.mxu0 0.0
    %89 = vmatprep.subr.mxu0 0.0
    %90 = vmatpush1.msra.mxu0 0.0
    %91 = vmatprep.subr.mxu0 0.0
    %92 = vmatpush1.msra.mxu0 0.0
    %93 = vmatprep.subr.mxu0 0.0
    %94 = vmatpush1.msra.mxu0 0.0
    %95 = vmatprep.mubr.f32.mxu0 0.0
    %96 = vmatmul.mubr.f32.gmra.mrb[0].mxu0 %v29
    %v97 = vpop.f32.mrb[0].mxu0
    %v98 = vadd.f32 %v25, %v97
    %v99 = vpop.f32.mrb[0].mxu0
    %100 = vdwg.mxu0
    %101 = vst [vmem:[#allocation2] sm:$0xff] %v98
    // Predicated region
    $region14: #{latent_classifier_forward.1} parent=1 // pred_check
      _
    $region15: #{latent_classifier_forward.1} parent=1 // pred_check_branch
      %103 = sbr.rel (0) target = $region17
    $region16: #{latent_classifier_forward.1} parent=1 // pred_region
      %s105 = ssub.s32 128, 128
      %106 = vsyncadd [#allocation3], %s105
      %s108 = sshll.u32 [#allocation2], 4
      %s109 = int_to_ptr.vmem [resolvable:$true] %s108
      %111 = dma.vmem_to_hbm [thread:$0]  %s109, 128, %s3, [#allocation3]
    $region17: #{latent_classifier_forward.1} parent=1 // pred_fallthru
      _
    // Predicated region
    $region18: #{latent_classifier_forward.1} parent=1 // pred_check
      _
    $region19: #{latent_classifier_forward.1} parent=1 // pred_check_branch
      %113 = sbr.rel (0) target = $region21
    $region20: #{latent_classifier_forward.1} parent=1 // pred_region
      %114 = dma.done [#allocation3], 128
    $region21: #{latent_classifier_forward.1} parent=1 // pred_fallthru
      _
    %115 = vsyncpa [#allocation3], 1

</llo_original>
